<compile_context>
chip_gen: v5e
topology: v5e:2x2
jax: 0.10.0
libtpu: 0.0.40
codegen_flags: <defaults>
</compile_context>

<pallas_src>
import math
import jax
import jax.numpy as jnp
from jax.experimental import pallas as pl
from jax.experimental.pallas import tpu as pltpu


# ---------------------------------------------------------------------------
# metapath helper (pure python, same semantics as the reference)
# ---------------------------------------------------------------------------
def metapath(types, relations, source, target, hops=2):
    final_paths = []
    current_paths = [[source]]
    for _ in range(hops):
        next_paths = []
        for current_path in current_paths:
            if len(current_path) == 1:
                target_t = current_path[0]
            else:
                target_t = relations[current_path[-1]]['source']
            for r in types[target_t]:
                new_path = current_path.copy()
                new_path.append(r)
                source_t = relations[r]['source']
                if source_t == target:
                    final_paths.append(new_path)
                else:
                    next_paths.append(new_path)
        current_paths = next_paths
    return final_paths


def _round_up(x, m):
    return (x + m - 1) // m * m


TM = 256        # row tile (sublane); 256-512 is the mem-bound sweet spot
LANE = 128      # lane-dense feature padding (vreg / MXU width)
_N_MOMENTS = 5  # CMD order (mean + central moments k = 2..5)


# ---------------------------------------------------------------------------
# kernels
# ---------------------------------------------------------------------------
def _linear_kernel(x_ref, w_ref, b_ref, o_ref):
    # one (TM, Fout_pad) output tile per grid step; weights/bias are resident
    o_ref[...] = (jnp.dot(x_ref[...], w_ref[...],
                          preferred_element_type=jnp.float32) + b_ref[...])


def _linear_moments_kernel(n_ref, x_ref, w_ref, b_ref, o_ref, mom_ref,
                           sums_ref):
    """y = x @ W + b per row tile, with a fused single-pass CMD moment
    reduction: masked raw power sums S_k = sum(y^k), k = 1..5, accumulate in
    VMEM scratch and are converted to [mean, central moments k=2..5] on the
    last grid step (binomial expansion).  Requires sequential grid execution
    ("arbitrary") because of the running scratch accumulator."""
    i = pl.program_id(0)
    last = pl.num_programs(0) - 1
    n = n_ref[0]

    y = (jnp.dot(x_ref[...], w_ref[...],
                 preferred_element_type=jnp.float32) + b_ref[...])
    o_ref[...] = y

    @pl.when(i == 0)
    def _():
        sums_ref[...] = jnp.zeros_like(sums_ref)

    tm, dp = y.shape
    # cheap (TM, 1) validity column; jnp.where broadcasts it across lanes.
    row_ids = jax.lax.broadcasted_iota(jnp.int32, (tm, 1), 0) + i * tm
    ym = jnp.where(row_ids < n, y, 0.0)

    pw = ym
    sums = [jnp.sum(pw, axis=0, keepdims=True)]            # k = 1
    for _k in range(2, _N_MOMENTS + 1):
        pw = pw * ym
        sums.append(jnp.sum(pw, axis=0, keepdims=True))    # k = 2..5
    pad = jnp.zeros((8 - _N_MOMENTS, dp), jnp.float32)
    sums_ref[...] += jnp.concatenate(sums + [pad], axis=0)

    @pl.when(i == last)
    def _():
        inv_n = 1.0 / n.astype(jnp.float32)
        m = sums_ref[...] * inv_n          # raw moments m_k in rows 0..4
        m1, m2, m3, m4, m5 = m[0:1], m[1:2], m[2:3], m[3:4], m[4:5]
        m1_2 = m1 * m1
        m1_3 = m1_2 * m1
        c2 = m2 - m1_2
        c3 = m3 - 3.0 * m1 * m2 + 2.0 * m1_3
        c4 = m4 - 4.0 * m1 * m3 + 6.0 * m1_2 * m2 - 3.0 * m1_2 * m1_2
        c5 = (m5 - 5.0 * m1 * m4 + 10.0 * m1_2 * m3 - 10.0 * m1_3 * m2
              + 4.0 * m1_3 * m1_2)
        zpad = jnp.zeros((8 - _N_MOMENTS, dp), jnp.float32)
        # row 0: mean, rows 1..4: central moments (k=2..5), rows 5..7: 0
        mom_ref[...] = jnp.concatenate([m1, c2, c3, c4, c5, zpad], axis=0)


def _cmd_finalize_kernel(m1_ref, m2_ref, o_ref):
    d = m1_ref[...] - m2_ref[...]                    # (8, dp)
    sq = jnp.sum(d * d, axis=1, keepdims=True)       # (8, 1)
    # pad rows are identically 0 in both slabs -> sqrt(0) = 0 contribution.
    o_ref[...] = jnp.sum(jnp.sqrt(sq), axis=0, keepdims=True)   # (1, 1)


# ---------------------------------------------------------------------------
# wrappers
# ---------------------------------------------------------------------------
def linear_pallas_padded(x, w, b, *, with_moments=False,
                         compute_dtype=jnp.bfloat16):
    """y = x @ w + b.  Returns (y_padded, moment_slab_or_None).  y_padded is
    the row/lane padded (N_pad, Fout_pad) f32 result; the valid region is
    [:N, :Fout] (pad rows hold `b`, pad lanes are exactly 0).  When
    with_moments=True the second output is the (8, Fout_pad) f32 CMD moment
    slab [mean; central moments k=2..5; zeros] over the true N rows."""
    n, f_in = x.shape
    f_out = w.shape[1]
    n_pad = _round_up(n, TM)
    f_in_pad = _round_up(f_in, LANE)
    f_out_pad = _round_up(f_out, LANE)

    # zero-pad + bf16 cast (MXU inputs, f32 accumulate).
    # TODO(synk): for large N this pad is an extra activation copy in HBM;
    # pre-pad/cast activations once upstream of the training loop to drop it.
    x_p = jnp.zeros((n_pad, f_in_pad), compute_dtype)
    x_p = x_p.at[:n, :f_in].set(x.astype(compute_dtype))
    w_p = jnp.zeros((f_in_pad, f_out_pad), compute_dtype)
    w_p = w_p.at[:f_in, :f_out].set(w.astype(compute_dtype))
    b_p = jnp.zeros((1, f_out_pad), jnp.float32)
    b_p = b_p.at[0, :f_out].set(b.astype(jnp.float32))

    # VMEM budget: (256x128 bf16 x2) + (128x128 bf16 x2) + (256x128 f32 x2)
    # + (8x128 f32) scratch ~ 0.6 MiB << 16/32 MiB scoped defaults on
    # v5e/v6e/v7x.  For large resident weights on v7x, single-buffer w/b
    # (pipeline_mode=pl.Buffered(1)) and add a K grid axis + f32 accumulator.
    if not with_moments:
        out = pl.pallas_call(
            _linear_kernel,
            out_shape=jax.ShapeDtypeStruct((n_pad, f_out_pad), jnp.float32),
            grid=(n_pad // TM,),
            in_specs=[
                pl.BlockSpec((TM, f_in_pad), lambda i: (i, 0)),
                pl.BlockSpec((f_in_pad, f_out_pad), lambda i: (0, 0)),
                pl.BlockSpec((1, f_out_pad), lambda i: (0, 0)),
            ],
            out_specs=pl.BlockSpec((TM, f_out_pad), lambda i: (i, 0)),
            compiler_params=pltpu.CompilerParams(
                dimension_semantics=("parallel",)),
        )(x_p, w_p, b_p)
        return out, None

    n_arr = jnp.array([n], dtype=jnp.int32)
    out, mom = pl.pallas_call(
        _linear_moments_kernel,
        out_shape=(jax.ShapeDtypeStruct((n_pad, f_out_pad), jnp.float32),
                   jax.ShapeDtypeStruct((8, f_out_pad), jnp.float32)),
        grid_spec=pltpu.PrefetchScalarGridSpec(
            num_scalar_prefetch=1,
            grid=(n_pad // TM,),
            in_specs=[
                pl.BlockSpec((TM, f_in_pad), lambda i, n_s: (i, 0)),
                pl.BlockSpec((f_in_pad, f_out_pad), lambda i, n_s: (0, 0)),
                pl.BlockSpec((1, f_out_pad), lambda i, n_s: (0, 0)),
            ],
            out_specs=(
                pl.BlockSpec((TM, f_out_pad), lambda i, n_s: (i, 0)),
                pl.BlockSpec((8, f_out_pad), lambda i, n_s: (0, 0)),
            ),
            scratch_shapes=[pltpu.VMEM((8, f_out_pad), jnp.float32)]),
        # must stay sequential: running scratch + last-step finalize.
        compiler_params=pltpu.CompilerParams(
            dimension_semantics=("arbitrary",)),
    )(n_arr, x_p, w_p, b_p)
    return out, mom


def cmd_from_moment_slabs(mom1, mom2):
    """Combine two (8, D_pad) moment slabs into the scalar CMD loss."""
    assert mom1.shape == mom2.shape
    out = pl.pallas_call(
        _cmd_finalize_kernel,
        out_shape=jax.ShapeDtypeStruct((1, 1), jnp.float32),
        in_specs=[pl.BlockSpec(memory_space=pltpu.MemorySpace.VMEM),
                  pl.BlockSpec(memory_space=pltpu.MemorySpace.VMEM)],
        out_specs=pl.BlockSpec(memory_space=pltpu.MemorySpace.VMEM),
    )(mom1, mom2)
    return out[0, 0]


# ---------------------------------------------------------------------------
# GNN (forward-pass port)
# ---------------------------------------------------------------------------
class GNN:
    def __init__(self, source_node, target_node, use_matching_loss,
                 matching_hops, types, relations, in_dims, hid_dim, rel_dim,
                 n_layers, key):
        self.source_node = source_node
        self.target_node = target_node
        self.use_matching_loss = use_matching_loss
        self.matching_hops = matching_hops
        self.types = types
        self.relations = relations
        self.n_layers = n_layers
        self.hid_dims = {t: hid_dim for t in types}
        self.rel_dims = {r: rel_dim for r in relations}

        self.matching_paths = metapath(types, relations, source_node,
                                       target_node, matching_hops)

        # matching_w: Linear(hid_dims[target], hid_dims[source], bias=False),
        # xavier-uniform init, stored [in, out].  (Kept for fidelity with the
        # reference __init__; not used by forward().)
        self.matching_w = {}
        for matching_id, matching_path in enumerate(self.matching_paths):
            for rel in reversed(matching_path[1:]):
                key, sub = jax.random.split(key)
                fan_in = self.hid_dims[target_node]
                fan_out = self.hid_dims[source_node]
                a = math.sqrt(6.0 / (fan_in + fan_out))
                self.matching_w[str(matching_id) + rel] = jax.random.uniform(
                    sub, (fan_in, fan_out), jnp.float32, -a, a)

        # TODO(synk): adapt_w is used by forward() but never defined in the
        # reference __init__ (abstract base class); synthesized here as a
        # per-type Linear(in_dims[t], hid_dim) so forward() is runnable.
        self.adapt_w = {}
        for t in sorted(types):
            key, kw, kb = jax.random.split(key, 3)
            fan_in, fan_out = in_dims[t], hid_dim
            a = math.sqrt(6.0 / (fan_in + fan_out))
            w = jax.random.uniform(kw, (fan_in, fan_out), jnp.float32, -a, a)
            bound = 1.0 / math.sqrt(fan_in)
            b = jax.random.uniform(kb, (fan_out,), jnp.float32, -bound, bound)
            self.adapt_w[t] = (w, b)

    def convolve(self, h, edges, layer):
        # TODO(synk): convolve() returns NotImplementedError in the reference
        # (abstract); treated as identity so the forward loop is runnable.
        return h

    def forward(self, feature, edges=None):
        # The CMD moment slabs are produced by the fused linear epilogue for
        # the source/target node types, avoiding an HBM round trip of the
        # padded embedding slab.
        # TODO(synk): this matches the reference only because convolve() is
        # the abstract identity placeholder; a non-identity convolve override
        # must recompute CMD on the post-convolve embeddings instead.
        need_moments = {self.source_node, self.target_node}
        h_pad, n_rows, mom = {}, {}, {}
        for t in feature:
            w, b = self.adapt_w[t]
            h_pad[t], mom_t = linear_pallas_padded(
                feature[t], w, b, with_moments=(t in need_moments))
            if mom_t is not None:
                mom[t] = mom_t
            n_rows[t] = feature[t].shape[0]
        for layer in range(self.n_layers):
            h_pad = self.convolve(h_pad, edges, layer)
        cmd_loss = cmd_from_moment_slabs(mom[self.source_node],
                                         mom[self.target_node])
        h = {t: h_pad[t][:n_rows[t], :self.hid_dims[t]] for t in feature}
        return h, cmd_loss


# ---------------------------------------------------------------------------
if __name__ == "__main__":
    # Small heterogeneous graph: two node types 's' (source) and 't' (target),
    # four relations; types[t] lists the relations pointing *into* t.
    types = {'s': ['ss', 'ts'], 't': ['st', 'tt']}
    relations = {
        'ss': {'source': 's', 'target': 's'},
        'ts': {'source': 't', 'target': 's'},
        'st': {'source': 's', 'target': 't'},
        'tt': {'source': 't', 'target': 't'},
    }
    in_dims = {'s': 24, 't': 40}
    hid_dim = 32
    n_s, n_t = 16, 24     # deliberately not multiples of the row tile

    key = jax.random.PRNGKey(0)
    key, kf_s, kf_t, kparams = jax.random.split(key, 4)
    feature = {
        's': jax.random.normal(kf_s, (n_s, in_dims['s']), jnp.float32),
        't': jax.random.normal(kf_t, (n_t, in_dims['t']), jnp.float32),
    }

    model = GNN(source_node='s', target_node='t', use_matching_loss=True,
                matching_hops=2, types=types, relations=relations,
                in_dims=in_dims, hid_dim=hid_dim, rel_dim=16, n_layers=2,
                key=kparams)

    h, cmd_loss = model.forward(feature)
    jax.block_until_ready((h, cmd_loss))

    # ---- pure-JAX reference checks -----------------------------------------
    def ref_cmd(x1, x2, n_moments=5):
        mx1, mx2 = x1.mean(0), x2.mean(0)
        sx1, sx2 = x1 - mx1, x2 - mx2
        out = jnp.sqrt(jnp.sum((mx1 - mx2) ** 2))
        for k in range(2, n_moments + 1):
            out = out + jnp.sqrt(
                jnp.sum(((sx1 ** k).mean(0) - (sx2 ** k).mean(0)) ** 2))
        return out

    # linear: compare against the same bf16-input / f32-accumulate contract
    for t in feature:
        w, b = model.adapt_w[t]
        h_ref_t = jnp.dot(feature[t].astype(jnp.bfloat16),
                          w.astype(jnp.bfloat16),
                          preferred_element_type=jnp.float32) + b
        assert h[t].shape == (feature[t].shape[0], hid_dim), t
        assert jnp.allclose(h[t], h_ref_t, atol=1e-3, rtol=1e-3), t
        # loose sanity check against the full-precision linear
        h_f32 = feature[t] @ w + b
        assert jnp.allclose(h[t], h_f32, atol=5e-2, rtol=5e-2), t

    # CMD: compare against pure-JAX f32 CMD of the Pallas embeddings
    loss_ref = ref_cmd(h['s'], h['t'])
    assert jnp.allclose(cmd_loss, loss_ref, atol=1e-3, rtol=1e-3), (
        float(cmd_loss), float(loss_ref))

    print("KERNEL_OK")
</pallas_src>

<mosaic_0001>
module attributes {stable_mosaic.version = 11 : i64} {
  func.func @_linear_moments_kernel(%arg0: i32, %arg1: memref<1xi32, #tpu.memory_space<smem>>, %arg2: memref<256x128xbf16, #tpu.memory_space<vmem>>, %arg3: memref<128x128xbf16, #tpu.memory_space<vmem>>, %arg4: memref<1x128xf32, #tpu.memory_space<vmem>>, %arg5: memref<256x128xf32, #tpu.memory_space<vmem>>, %arg6: memref<8x128xf32, #tpu.memory_space<vmem>>, %arg7: memref<8x128xf32, #tpu.memory_space<vmem>>) attributes {dimension_semantics = [#tpu.dimension_semantics<arbitrary>], iteration_bounds = array<i64: 1>, scalar_prefetch = 1 : i64, scratch_operands = 1 : i64, tpu.core_type = #tpu.core_type<tc>, window_params = [{transform_indices = @transform_0, window_bounds = array<i64: 256, 128>}, {pipeline_mode = #tpu.pipeline_mode<synchronous>, transform_indices = @transform_1, window_bounds = array<i64: 128, 128>}, {pipeline_mode = #tpu.pipeline_mode<synchronous>, transform_indices = @transform_2, window_bounds = array<i64: 1, 128>}, {transform_indices = @transform_3, window_bounds = array<i64: 256, 128>}, {pipeline_mode = #tpu.pipeline_mode<synchronous>, transform_indices = @transform_4, window_bounds = array<i64: 8, 128>}]} {
    %c0 = arith.constant 0 : index
    %0 = memref.load %arg1[%c0] : memref<1xi32, #tpu.memory_space<smem>>
    %c0_0 = arith.constant 0 : index
    %c0_1 = arith.constant 0 : index
    %1 = vector.load %arg2[%c0_0, %c0_1] : memref<256x128xbf16, #tpu.memory_space<vmem>>, vector<256x128xbf16>
    %c0_2 = arith.constant 0 : index
    %c0_3 = arith.constant 0 : index
    %2 = vector.load %arg3[%c0_2, %c0_3] : memref<128x128xbf16, #tpu.memory_space<vmem>>, vector<128x128xbf16>
    %cst = arith.constant dense<0.000000e+00> : vector<256x128xf32>
    %3 = tpu.matmul %1, %2, %cst {dimension_numbers = #tpu.dot_dimension_numbers<[1], [0], [0], [1], [0, 0, 1, 1], [], []>} : vector<256x128xbf16>, vector<128x128xbf16>, vector<256x128xf32> -> vector<256x128xf32>
    %c0_4 = arith.constant 0 : index
    %c0_5 = arith.constant 0 : index
    %4 = vector.load %arg4[%c0_4, %c0_5] : memref<1x128xf32, #tpu.memory_space<vmem>>, vector<1x128xf32>
    %5 = vector.broadcast %4 : vector<1x128xf32> to vector<256x128xf32>
    %6 = arith.addf %3, %5 : vector<256x128xf32>
    %c0_6 = arith.constant 0 : index
    %c0_7 = arith.constant 0 : index
    %7 = vector.load %arg5[%c0_6, %c0_7] : memref<256x128xf32, #tpu.memory_space<vmem>>, vector<256x128xf32>
    tpu.vector_store %arg5[%c0_6, %c0_7], %6 {strides = array<i32>} : memref<256x128xf32, #tpu.memory_space<vmem>>, vector<256x128xf32>,
    %c0_i32 = arith.constant 0 : i32
    %8 = arith.cmpi eq, %arg0, %c0_i32 : i32
    %9 = arith.extui %8 : i1 to i32
    %c0_i32_8 = arith.constant 0 : i32
    %10 = arith.cmpi ne, %9, %c0_i32_8 : i32
    scf.if %10 {
      %cst_22 = arith.constant 0.000000e+00 : f32
      %43 = vector.broadcast %cst_22 : f32 to vector<8x128xf32>
      %c0_23 = arith.constant 0 : index
      %c0_24 = arith.constant 0 : index
      %44 = vector.load %arg7[%c0_23, %c0_24] : memref<8x128xf32, #tpu.memory_space<vmem>>, vector<8x128xf32>
      tpu.vector_store %arg7[%c0_23, %c0_24], %43 {strides = array<i32>} : memref<8x128xf32, #tpu.memory_space<vmem>>, vector<8x128xf32>,
    } else {
    }
    %11 = tpu.iota {dimensions = array<i32: 0>} : vector<256x1xi32>
    %c256_i32 = arith.constant 256 : i32
    %12 = arith.muli %arg0, %c256_i32 : i32
    %13 = vector.broadcast %12 : i32 to vector<256x1xi32>
    %14 = arith.addi %11, %13 : vector<256x1xi32>
    %15 = vector.broadcast %0 : i32 to vector<256x1xi32>
    %16 = arith.cmpi slt, %14, %15 : vector<256x1xi32>
    %cst_9 = arith.constant 0.000000e+00 : f32
    %17 = vector.shape_cast %16 : vector<256x1xi1> to vector<256x1xi1>
    %18 = vector.broadcast %17 : vector<256x1xi1> to vector<256x128xi1>
    %19 = vector.broadcast %cst_9 : f32 to vector<256x128xf32>
    %20 = arith.select %18, %6, %19 : vector<256x128xi1>, vector<256x128xf32>
    %cst_10 = arith.constant dense<0.000000e+00> : vector<128xf32>
    %21 = vector.multi_reduction <add>, %20, %cst_10 [0] : vector<256x128xf32> to vector<128xf32>
    %22 = vector.shape_cast %21 : vector<128xf32> to vector<1x128xf32>
    %23 = arith.mulf %20, %20 : vector<256x128xf32>
    %cst_11 = arith.constant dense<0.000000e+00> : vector<128xf32>
    %24 = vector.multi_reduction <add>, %23, %cst_11 [0] : vector<256x128xf32> to vector<128xf32>
    %25 = vector.shape_cast %24 : vector<128xf32> to vector<1x128xf32>
    %26 = arith.mulf %23, %20 : vector<256x128xf32>
    %cst_12 = arith.constant dense<0.000000e+00> : vector<128xf32>
    %27 = vector.multi_reduction <add>, %26, %cst_12 [0] : vector<256x128xf32> to vector<128xf32>
    %28 = vector.shape_cast %27 : vector<128xf32> to vector<1x128xf32>
    %29 = arith.mulf %26, %20 : vector<256x128xf32>
    %cst_13 = arith.constant dense<0.000000e+00> : vector<128xf32>
    %30 = vector.multi_reduction <add>, %29, %cst_13 [0] : vector<256x128xf32> to vector<128xf32>
    %31 = vector.shape_cast %30 : vector<128xf32> to vector<1x128xf32>
    %32 = arith.mulf %29, %20 : vector<256x128xf32>
    %cst_14 = arith.constant dense<0.000000e+00> : vector<128xf32>
    %33 = vector.multi_reduction <add>, %32, %cst_14 [0] : vector<256x128xf32> to vector<128xf32>
    %34 = vector.shape_cast %33 : vector<128xf32> to vector<1x128xf32>
    %cst_15 = arith.constant 0.000000e+00 : f32
    %35 = vector.broadcast %cst_15 : f32 to vector<3x128xf32>
    %c0_16 = arith.constant 0 : index
    %c0_17 = arith.constant 0 : index
    %36 = vector.load %arg7[%c0_16, %c0_17] : memref<8x128xf32, #tpu.memory_space<vmem>>, vector<8x128xf32>
    %37 = tpu.concatenate %22, %25, %28, %31, %34, %35 in 0 : vector<1x128xf32>, vector<1x128xf32>, vector<1x128xf32>, vector<1x128xf32>, vector<1x128xf32>, vector<3x128xf32> -> vector<8x128xf32>
    %38 = arith.addf %36, %37 : vector<8x128xf32>
    %c0_18 = arith.constant 0 : index
    %c0_19 = arith.constant 0 : index
    %39 = vector.load %arg7[%c0_18, %c0_19] : memref<8x128xf32, #tpu.memory_space<vmem>>, vector<8x128xf32>
    tpu.vector_store %arg7[%c0_18, %c0_19], %38 {strides = array<i32>} : memref<8x128xf32, #tpu.memory_space<vmem>>, vector<8x128xf32>,
    %c0_i32_20 = arith.constant 0 : i32
    %40 = arith.cmpi eq, %arg0, %c0_i32_20 : i32
    %41 = arith.extui %40 : i1 to i32
    %c0_i32_21 = arith.constant 0 : i32
    %42 = arith.cmpi ne, %41, %c0_i32_21 : i32
    scf.if %42 {
      %43 = arith.sitofp %0 : i32 to f32
      %cst_22 = arith.constant 1.000000e+00 : f32
      %44 = arith.divf %cst_22, %43 : f32
      %c0_23 = arith.constant 0 : index
      %c0_24 = arith.constant 0 : index
      %45 = vector.load %arg7[%c0_23, %c0_24] : memref<8x128xf32, #tpu.memory_space<vmem>>, vector<8x128xf32>
      %46 = vector.broadcast %44 : f32 to vector<8x128xf32>
      %47 = arith.mulf %45, %46 : vector<8x128xf32>
      %48 = vector.extract_strided_slice %47 {offsets = [0, 0], sizes = [1, 128], strides = [1, 1]} : vector<8x128xf32> to vector<1x128xf32>
      %49 = vector.extract_strided_slice %47 {offsets = [1, 0], sizes = [1, 128], strides = [1, 1]} : vector<8x128xf32> to vector<1x128xf32>
      %50 = vector.extract_strided_slice %47 {offsets = [2, 0], sizes = [1, 128], strides = [1, 1]} : vector<8x128xf32> to vector<1x128xf32>
      %51 = vector.extract_strided_slice %47 {offsets = [3, 0], sizes = [1, 128], strides = [1, 1]} : vector<8x128xf32> to vector<1x128xf32>
      %52 = vector.extract_strided_slice %47 {offsets = [4, 0], sizes = [1, 128], strides = [1, 1]} : vector<8x128xf32> to vector<1x128xf32>
      %53 = arith.mulf %48, %48 : vector<1x128xf32>
      %54 = arith.mulf %53, %48 : vector<1x128xf32>
      %55 = arith.subf %49, %53 : vector<1x128xf32>
      %cst_25 = arith.constant 3.000000e+00 : f32
      %56 = vector.broadcast %cst_25 : f32 to vector<1x128xf32>
      %57 = arith.mulf %56, %48 : vector<1x128xf32>
      %58 = arith.mulf %57, %49 : vector<1x128xf32>
      %59 = arith.subf %50, %58 : vector<1x128xf32>
      %cst_26 = arith.constant 2.000000e+00 : f32
      %60 = vector.broadcast %cst_26 : f32 to vector<1x128xf32>
      %61 = arith.mulf %60, %54 : vector<1x128xf32>
      %62 = arith.addf %59, %61 : vector<1x128xf32>
      %cst_27 = arith.constant 4.000000e+00 : f32
      %63 = vector.broadcast %cst_27 : f32 to vector<1x128xf32>
      %64 = arith.mulf %63, %48 : vector<1x128xf32>
      %65 = arith.mulf %64, %50 : vector<1x128xf32>
      %66 = arith.subf %51, %65 : vector<1x128xf32>
      %cst_28 = arith.constant 6.000000e+00 : f32
      %67 = vector.broadcast %cst_28 : f32 to vector<1x128xf32>
      %68 = arith.mulf %67, %53 : vector<1x128xf32>
      %69 = arith.mulf %68, %49 : vector<1x128xf32>
      %70 = arith.addf %66, %69 : vector<1x128xf32>
      %cst_29 = arith.constant 3.000000e+00 : f32
      %71 = vector.broadcast %cst_29 : f32 to vector<1x128xf32>
      %72 = arith.mulf %71, %53 : vector<1x128xf32>
      %73 = arith.mulf %72, %53 : vector<1x128xf32>
      %74 = arith.subf %70, %73 : vector<1x128xf32>
      %cst_30 = arith.constant 5.000000e+00 : f32
      %75 = vector.broadcast %cst_30 : f32 to vector<1x128xf32>
      %76 = arith.mulf %75, %48 : vector<1x128xf32>
      %77 = arith.mulf %76, %51 : vector<1x128xf32>
      %78 = arith.subf %52, %77 : vector<1x128xf32>
      %cst_31 = arith.constant 1.000000e+01 : f32
      %79 = vector.broadcast %cst_31 : f32 to vector<1x128xf32>
      %80 = arith.mulf %79, %53 : vector<1x128xf32>
      %81 = arith.mulf %80, %50 : vector<1x128xf32>
      %82 = arith.addf %78, %81 : vector<1x128xf32>
      %cst_32 = arith.constant 1.000000e+01 : f32
      %83 = vector.broadcast %cst_32 : f32 to vector<1x128xf32>
      %84 = arith.mulf %83, %54 : vector<1x128xf32>
      %85 = arith.mulf %84, %49 : vector<1x128xf32>
      %86 = arith.subf %82, %85 : vector<1x128xf32>
      %cst_33 = arith.constant 4.000000e+00 : f32
      %87 = vector.broadcast %cst_33 : f32 to vector<1x128xf32>
      %88 = arith.mulf %87, %54 : vector<1x128xf32>
      %89 = arith.mulf %88, %53 : vector<1x128xf32>
      %90 = arith.addf %86, %89 : vector<1x128xf32>
      %cst_34 = arith.constant 0.000000e+00 : f32
      %91 = vector.broadcast %cst_34 : f32 to vector<3x128xf32>
      %92 = tpu.concatenate %48, %55, %62, %74, %90, %91 in 0 : vector<1x128xf32>, vector<1x128xf32>, vector<1x128xf32>, vector<1x128xf32>, vector<1x128xf32>, vector<3x128xf32> -> vector<8x128xf32>
      %c0_35 = arith.constant 0 : index
      %c0_36 = arith.constant 0 : index
      %93 = vector.load %arg6[%c0_35, %c0_36] : memref<8x128xf32, #tpu.memory_space<vmem>>, vector<8x128xf32>
      tpu.vector_store %arg6[%c0_35, %c0_36], %92 {strides = array<i32>} : memref<8x128xf32, #tpu.memory_space<vmem>>, vector<8x128xf32>,
    } else {
    }
    return
  }
  func.func @transform_0(%arg0: i32, %arg1: memref<1xi32, #tpu.memory_space<smem>>) -> (i32, i32) {
    %c0_i32 = arith.constant 0 : i32
    %c0_i32_0 = arith.constant 0 : i32
    return %arg0, %c0_i32 : i32, i32
  }
  func.func @transform_1(%arg0: i32, %arg1: memref<1xi32, #tpu.memory_space<smem>>) -> (i32, i32) {
    %c0_i32 = arith.constant 0 : i32
    %c0_i32_0 = arith.constant 0 : i32
    %c0_i32_1 = arith.constant 0 : i32
    return %c0_i32, %c0_i32_0 : i32, i32
  }
  func.func @transform_2(%arg0: i32, %arg1: memref<1xi32, #tpu.memory_space<smem>>) -> (i32, i32) {
    %c0_i32 = arith.constant 0 : i32
    %c0_i32_0 = arith.constant 0 : i32
    %c0_i32_1 = arith.constant 0 : i32
    return %c0_i32, %c0_i32_0 : i32, i32
  }
  func.func @transform_3(%arg0: i32, %arg1: memref<1xi32, #tpu.memory_space<smem>>) -> (i32, i32) {
    %c0_i32 = arith.constant 0 : i32
    %c0_i32_0 = arith.constant 0 : i32
    return %arg0, %c0_i32 : i32, i32
  }
  func.func @transform_4(%arg0: i32, %arg1: memref<1xi32, #tpu.memory_space<smem>>) -> (i32, i32) {
    %c0_i32 = arith.constant 0 : i32
    %c0_i32_0 = arith.constant 0 : i32
    %c0_i32_1 = arith.constant 0 : i32
    return %c0_i32, %c0_i32_0 : i32, i32
  }
}

</mosaic_0001>

<llo_original>
// kernel: tpu_custom_call.1
$region0: #{tpu_custom_call.1}
  #allocation0 [shape = 'u32[]', space=smem, size = 0x4, offset = 0x4, fixed_abs, tag = 'smem constant byte address 0x4 - core index']
  #allocation1 [shape = 'u32[72,128]{1,0:T(1,128)}', space=vmem, size = 0x9000, scoped, tag = 'internal scratch']
  #allocation2 [shape = 'f32[8,128]{1,0:T(8,128)}', space=vmem, size = 0x1000, scoped, tag = 'scratch operand']
  #allocation3 [shape = 's32[1]{0}', space=sflag, size = 0x4, scoped, tag = 'scoped memory for tpu_custom_call.1']
  #allocation4 [shape = 's32[1]{0:T(128)S(6)}', space=smem, size = 0x200, scoped, tag = 'prefetched SMEM operand 0']
  %s0 = inlined_call_operand.<no memory space> [shape: s32[1], index: 0, kind: input, shape index: {}]
  %s1 = inlined_call_operand.hbm [shape: bf16[256,128], index: 1, kind: input, shape index: {}]
  %s2 = inlined_call_operand.hbm [shape: bf16[128,128], index: 2, kind: input, shape index: {}]
  %s3 = inlined_call_operand.vmem [shape: f32[1,128], index: 3, kind: input, shape index: {}]
  %s4 = inlined_call_operand.hbm [shape: f32[256,128], index: 4, kind: output, shape index: {0}]
  %s5 = inlined_call_operand.hbm [shape: f32[8,128], index: 5, kind: output, shape index: {1}]
  %6 = xla_tuple %s4, %s5
  %s7 = sld [smem:[#allocation0]]
  $region46: #{tpu_custom_call.1} parent=0
    _
  %s9 = ssub.s32 1, %s7
  %s10 = scalar_select 0, %s9, %s7
  %11 = sst [smem:[#allocation4]] %s0
  $region1: #{tpu_custom_call.1} parent=0
    #allocation5 [shape = 'u8[65536]{0}', space=vmem, size = 0x10000, scoped, tag = 'input window, operand 1, single buffered']
    #allocation6 [shape = 's32[1]{0}', space=sflag, size = 0x4, scoped, tag = 'scoped memory for tpu_custom_call.1']
    #allocation7 [shape = 's32[1]{0}', space=sflag, size = 0x4, scoped, tag = 'scoped memory for tpu_custom_call.1']
    #allocation8 [shape = 'u8[32768]{0}', space=vmem, size = 0x8000, scoped, tag = 'input window, operand 2, single buffered']
    #allocation9 [shape = 's32[1]{0}', space=sflag, size = 0x4, scoped, tag = 'scoped memory for tpu_custom_call.1']
    #allocation10 [shape = 'u8[131072]{0}', space=vmem, size = 0x20000, scoped, tag = 'output window, operand 0, single buffered']
    #allocation11 [shape = 'u8[4096]{0}', space=vmem, size = 0x1000, scoped, tag = 'output window, operand 1, single buffered']
    #allocation12 [shape = 's32[1]{0}', space=sflag, size = 0x4, scoped, tag = 'scoped memory for tpu_custom_call.1']
    %12 = vsyncpa [#allocation6], 0
    %13 = vsyncpa [#allocation9], 0
    %14 = vsyncpa [#allocation7], 0
    %15 = vsyncpa [#allocation12], 0
    // Predicated region
    $region2: #{tpu_custom_call.1} parent=1 // pred_check
      _
    $region3: #{tpu_custom_call.1} parent=1 // pred_check_branch
      %17 = sbr.rel (0) target = $region5
    $region4: #{tpu_custom_call.1} parent=1 // pred_region
      %19 = vsyncadd [#allocation6], 0
      %s20 = sshll.u32 %s1, 4
      %s21 = int_to_ptr.hbm [resolvable:$true] %s20
      %s22 = sshll.u32 [#allocation5], 4
      %s23 = int_to_ptr.vmem [resolvable:$true] %s22
      %28 = dma.hbm_to_vmem [thread:$0]  %s21, 2048, %s23, [#allocation6], 64, 64, 4
    $region5: #{tpu_custom_call.1} parent=1 // pred_fallthru
      _
    // Predicated region
    $region6: #{tpu_custom_call.1} parent=1 // pred_check
      _
    $region7: #{tpu_custom_call.1} parent=1 // pred_check_branch
      %30 = sbr.rel (0) target = $region9
    $region8: #{tpu_custom_call.1} parent=1 // pred_region
      %32 = vsyncadd [#allocation9], 0
      %s33 = sshll.u32 %s2, 4
      %s34 = int_to_ptr.hbm [resolvable:$true] %s33
      %s35 = sshll.u32 [#allocation8], 4
      %s36 = int_to_ptr.vmem [resolvable:$true] %s35
      %41 = dma.hbm_to_vmem [thread:$0]  %s34, 1024, %s36, [#allocation9], 64, 64, 4
    $region9: #{tpu_custom_call.1} parent=1 // pred_fallthru
      _
    // Predicated region
    $region10: #{tpu_custom_call.1} parent=1 // pred_check
      _
    $region11: #{tpu_custom_call.1} parent=1 // pred_check_branch
      %43 = sbr.rel (0) target = $region13
    $region12: #{tpu_custom_call.1} parent=1 // pred_region
      _
    $region13: #{tpu_custom_call.1} parent=1 // pred_fallthru
      _
    // Predicated region
    $region14: #{tpu_custom_call.1} parent=1 // pred_check
      _
    $region15: #{tpu_custom_call.1} parent=1 // pred_check_branch
      %45 = sbr.rel (0) target = $region17
    $region16: #{tpu_custom_call.1} parent=1 // pred_region
      %47 = dma.done [#allocation6], 2048
    $region17: #{tpu_custom_call.1} parent=1 // pred_fallthru
      _
    // Predicated region
    $region18: #{tpu_custom_call.1} parent=1 // pred_check
      _
    $region19: #{tpu_custom_call.1} parent=1 // pred_check_branch
      %49 = sbr.rel (0) target = $region21
    $region20: #{tpu_custom_call.1} parent=1 // pred_region
      %51 = dma.done [#allocation9], 1024
    $region21: #{tpu_custom_call.1} parent=1 // pred_fallthru
      _
    %s52 = sld [smem:[#allocation4]]
    %v53 = vld [vmem:[#allocation5] sm:$0xf]
    %v54 = vld [vmem:[#allocation5 + $0x4] sm:$0xf]
    %v55 = vld [vmem:[#allocation5 + $0x8] sm:$0xf]
    %v56 = vld [vmem:[#allocation5 + $0xc] sm:$0xf]
    %v57 = vld [vmem:[#allocation5 + $0x10] sm:$0xf]
    %v58 = vld [vmem:[#allocation5 + $0x14] sm:$0xf]
    %v59 = vld [vmem:[#allocation5 + $0x18] sm:$0xf]
    %v60 = vld [vmem:[#allocation5 + $0x1c] sm:$0xf]
    %v61 = vld [vmem:[#allocation5 + $0x20] sm:$0xf]
    %v62 = vld [vmem:[#allocation5 + $0x24] sm:$0xf]
    %v63 = vld [vmem:[#allocation5 + $0x28] sm:$0xf]
    %v64 = vld [vmem:[#allocation5 + $0x2c] sm:$0xf]
    %v65 = vld [vmem:[#allocation5 + $0x30] sm:$0xf]
    %v66 = vld [vmem:[#allocation5 + $0x34] sm:$0xf]
    %v67 = vld [vmem:[#allocation5 + $0x38] sm:$0xf]
    %v68 = vld [vmem:[#allocation5 + $0x3c] sm:$0xf]
    %v69 = vld [vmem:[#allocation5 + $0x40] sm:$0xf]
    %v70 = vld [vmem:[#allocation5 + $0x44] sm:$0xf]
    %v71 = vld [vmem:[#allocation5 + $0x48] sm:$0xf]
    %v72 = vld [vmem:[#allocation5 + $0x4c] sm:$0xf]
    %v73 = vld [vmem:[#allocation5 + $0x50] sm:$0xf]
    %v74 = vld [vmem:[#allocation5 + $0x54] sm:$0xf]
    %v75 = vld [vmem:[#allocation5 + $0x58] sm:$0xf]
    %v76 = vld [vmem:[#allocation5 + $0x5c] sm:$0xf]
    %v77 = vld [vmem:[#allocation5 + $0x60] sm:$0xf]
    %v78 = vld [vmem:[#allocation5 + $0x64] sm:$0xf]
    %v79 = vld [vmem:[#allocation5 + $0x68] sm:$0xf]
    %v80 = vld [vmem:[#allocation5 + $0x6c] sm:$0xf]
    %v81 = vld [vmem:[#allocation5 + $0x70] sm:$0xf]
    %v82 = vld [vmem:[#allocation5 + $0x74] sm:$0xf]
    %v83 = vld [vmem:[#allocation5 + $0x78] sm:$0xf]
    %v84 = vld [vmem:[#allocation5 + $0x7c] sm:$0xf]
    %v85 = vld [vmem:[#allocation8] sm:$0xf]
    %v86 = vld [vmem:[#allocation8 + $0x4] sm:$0xf]
    %v87 = vld [vmem:[#allocation8 + $0x8] sm:$0xf]
    %v88 = vld [vmem:[#allocation8 + $0xc] sm:$0xf]
    %v89 = vld [vmem:[#allocation8 + $0x10] sm:$0xf]
    %v90 = vld [vmem:[#allocation8 + $0x14] sm:$0xf]
    %v91 = vld [vmem:[#allocation8 + $0x18] sm:$0xf]
    %v92 = vld [vmem:[#allocation8 + $0x1c] sm:$0xf]
    %v93 = vld [vmem:[#allocation8 + $0x20] sm:$0xf]
    %v94 = vld [vmem:[#allocation8 + $0x24] sm:$0xf]
    %v95 = vld [vmem:[#allocation8 + $0x28] sm:$0xf]
    %v96 = vld [vmem:[#allocation8 + $0x2c] sm:$0xf]
    %v97 = vld [vmem:[#allocation8 + $0x30] sm:$0xf]
    %v98 = vld [vmem:[#allocation8 + $0x34] sm:$0xf]
    %v99 = vld [vmem:[#allocation8 + $0x38] sm:$0xf]
    %v100 = vld [vmem:[#allocation8 + $0x3c] sm:$0xf]
    %v101 = vld [vmem:[%s3] sm:$0x1]
    %v103 = vperm.slane %v101, 0
    %v137 = vunpack.c.l.b16 %v53
    %v138 = vunpack.c.l.b16 %v54
    %v139 = vunpack.c.l.b16 %v55
    %v140 = vunpack.c.l.b16 %v56
    %v141 = vunpack.c.l.b16 %v57
    %v142 = vunpack.c.l.b16 %v58
    %v143 = vunpack.c.l.b16 %v59
    %v144 = vunpack.c.l.b16 %v60
    %v145 = vunpack.c.l.b16 %v61
    %v146 = vunpack.c.l.b16 %v62
    %v147 = vunpack.c.l.b16 %v63
    %v148 = vunpack.c.l.b16 %v64
    %v149 = vunpack.c.l.b16 %v65
    %v150 = vunpack.c.l.b16 %v66
    %v151 = vunpack.c.l.b16 %v67
    %v152 = vunpack.c.l.b16 %v68
    %v153 = vunpack.c.l.b16 %v69
    %v154 = vunpack.c.l.b16 %v70
    %v155 = vunpack.c.l.b16 %v71
    %v156 = vunpack.c.l.b16 %v72
    %v157 = vunpack.c.l.b16 %v73
    %v158 = vunpack.c.l.b16 %v74
    %v159 = vunpack.c.l.b16 %v75
    %v160 = vunpack.c.l.b16 %v76
    %v161 = vunpack.c.l.b16 %v77
    %v162 = vunpack.c.l.b16 %v78
    %v163 = vunpack.c.l.b16 %v79
    %v164 = vunpack.c.l.b16 %v80
    %v165 = vunpack.c.l.b16 %v81
    %v166 = vunpack.c.l.b16 %v82
    %v167 = vunpack.c.l.b16 %v83
    %v168 = vunpack.c.l.b16 %v84
    %v169 = vpack.c.b16 %v138, %v137
    %v170 = vpack.c.b16 %v140, %v139
    %v171 = vpack.c.b16 %v142, %v141
    %v172 = vpack.c.b16 %v144, %v143
    %v173 = vpack.c.b16 %v146, %v145
    %v174 = vpack.c.b16 %v148, %v147
    %v175 = vpack.c.b16 %v150, %v149
    %v176 = vpack.c.b16 %v152, %v151
    %v177 = vpack.c.b16 %v154, %v153
    %v178 = vpack.c.b16 %v156, %v155
    %v179 = vpack.c.b16 %v158, %v157
    %v180 = vpack.c.b16 %v160, %v159
    %v181 = vpack.c.b16 %v162, %v161
    %v182 = vpack.c.b16 %v164, %v163
    %v183 = vpack.c.b16 %v166, %v165
    %v184 = vpack.c.b16 %v168, %v167
    %v217 = vunpack.c.l.b16 %v85
    %v218 = vunpack.c.l.b16 %v86
    %v219 = vunpack.c.l.b16 %v87
    %v220 = vunpack.c.l.b16 %v88
    %v221 = vunpack.c.l.b16 %v89
    %v222 = vunpack.c.l.b16 %v90
    %v223 = vunpack.c.l.b16 %v91
    %v224 = vunpack.c.l.b16 %v92
    %v225 = vunpack.c.l.b16 %v93
    %v226 = vunpack.c.l.b16 %v94
    %v227 = vunpack.c.l.b16 %v95
    %v228 = vunpack.c.l.b16 %v96
    %v229 = vunpack.c.l.b16 %v97
    %v230 = vunpack.c.l.b16 %v98
    %v231 = vunpack.c.l.b16 %v99
    %v232 = vunpack.c.l.b16 %v100
    %v233 = vpack.c.b16 %v218, %v217
    %v234 = vpack.c.b16 %v220, %v219
    %v235 = vpack.c.b16 %v222, %v221
    %v236 = vpack.c.b16 %v224, %v223
    %v237 = vpack.c.b16 %v226, %v225
    %v238 = vpack.c.b16 %v228, %v227
    %v239 = vpack.c.b16 %v230, %v229
    %v240 = vpack.c.b16 %v232, %v231
    %249 = vmatpush.bf16.msra.mxu0 %v240
    %250 = vmatpush.bf16.msra.mxu0 %v239
    %251 = vmatpush.bf16.msra.mxu0 %v238
    %252 = vmatpush.bf16.msra.mxu0 %v237
    %253 = vmatpush.bf16.msra.mxu0 %v236
    %254 = vmatpush.bf16.msra.mxu0 %v235
    %255 = vmatpush.bf16.msra.mxu0 %v234
    %256 = vmatpush.bf16.msra.mxu0 %v233
    %257 = vmatmul.bf16.gmra.mxu0 %v169
    %v258 = vpop.f32.mrf.mxu0
    %v259 = vadd.f32 %v103, %v258
    %v260 = vpop.f32.mrf.mxu0
    %v261 = vadd.f32 %v103, %v260
    %262 = vmatmul.bf16.gmra.mxu0 %v170
    %v263 = vpop.f32.mrf.mxu0
    %v264 = vadd.f32 %v103, %v263
    %v265 = vpop.f32.mrf.mxu0
    %v266 = vadd.f32 %v103, %v265
    %267 = vmatmul.bf16.gmra.mxu0 %v171
    %v268 = vpop.f32.mrf.mxu0
    %v269 = vadd.f32 %v103, %v268
    %v270 = vpop.f32.mrf.mxu0
    %v271 = vadd.f32 %v103, %v270
    %272 = vmatmul.bf16.gmra.mxu0 %v172
    %v273 = vpop.f32.mrf.mxu0
    %v274 = vadd.f32 %v103, %v273
    %v275 = vpop.f32.mrf.mxu0
    %v276 = vadd.f32 %v103, %v275
    %277 = vmatmul.bf16.gmra.mxu0 %v173
    %v278 = vpop.f32.mrf.mxu0
    %v279 = vadd.f32 %v103, %v278
    %v280 = vpop.f32.mrf.mxu0
    %v281 = vadd.f32 %v103, %v280
    %282 = vmatmul.bf16.gmra.mxu0 %v174
    %v283 = vpop.f32.mrf.mxu0
    %v284 = vadd.f32 %v103, %v283
    %v285 = vpop.f32.mrf.mxu0
    %v286 = vadd.f32 %v103, %v285
    %287 = vmatmul.bf16.gmra.mxu0 %v175
    %v288 = vpop.f32.mrf.mxu0
    %v289 = vadd.f32 %v103, %v288
    %v290 = vpop.f32.mrf.mxu0
    %v291 = vadd.f32 %v103, %v290
    %292 = vmatmul.bf16.gmra.mxu0 %v176
    %v293 = vpop.f32.mrf.mxu0
    %v294 = vadd.f32 %v103, %v293
    %v295 = vpop.f32.mrf.mxu0
    %v296 = vadd.f32 %v103, %v295
    %297 = vmatmul.bf16.gmra.mxu0 %v177
    %v298 = vpop.f32.mrf.mxu0
    %v299 = vadd.f32 %v103, %v298
    %v300 = vpop.f32.mrf.mxu0
    %v301 = vadd.f32 %v103, %v300
    %302 = vmatmul.bf16.gmra.mxu0 %v178
    %v303 = vpop.f32.mrf.mxu0
    %v304 = vadd.f32 %v103, %v303
    %v305 = vpop.f32.mrf.mxu0
    %v306 = vadd.f32 %v103, %v305
    %307 = vmatmul.bf16.gmra.mxu0 %v179
    %v308 = vpop.f32.mrf.mxu0
    %v309 = vadd.f32 %v103, %v308
    %v310 = vpop.f32.mrf.mxu0
    %v311 = vadd.f32 %v103, %v310
    %312 = vmatmul.bf16.gmra.mxu0 %v180
    %v313 = vpop.f32.mrf.mxu0
    %v314 = vadd.f32 %v103, %v313
    %v315 = vpop.f32.mrf.mxu0
    %v316 = vadd.f32 %v103, %v315
    %317 = vmatmul.bf16.gmra.mxu0 %v181
    %v318 = vpop.f32.mrf.mxu0
    %v319 = vadd.f32 %v103, %v318
    %v320 = vpop.f32.mrf.mxu0
    %v321 = vadd.f32 %v103, %v320
    %322 = vmatmul.bf16.gmra.mxu0 %v182
    %v323 = vpop.f32.mrf.mxu0
    %v324 = vadd.f32 %v103, %v323
    %v325 = vpop.f32.mrf.mxu0
    %v326 = vadd.f32 %v103, %v325
    %327 = vmatmul.bf16.gmra.mxu0 %v183
    %v328 = vpop.f32.mrf.mxu0
    %v329 = vadd.f32 %v103, %v328
    %v330 = vpop.f32.mrf.mxu0
    %v331 = vadd.f32 %v103, %v330
    %332 = vmatmul.bf16.gmra.mxu0 %v184
    %v333 = vpop.f32.mrf.mxu0
    %v334 = vadd.f32 %v103, %v333
    %v335 = vpop.f32.mrf.mxu0
    %v336 = vadd.f32 %v103, %v335
    %337 = vdwg.mxu0
    %338 = vst [vmem:[#allocation10] sm:$0xff] %v259
    %339 = vst [vmem:[#allocation10 + $0x8] sm:$0xff] %v261
    %340 = vst [vmem:[#allocation10 + $0x10] sm:$0xff] %v264
    %341 = vst [vmem:[#allocation10 + $0x18] sm:$0xff] %v266
    %342 = vst [vmem:[#allocation10 + $0x20] sm:$0xff] %v269
    %343 = vst [vmem:[#allocation10 + $0x28] sm:$0xff] %v271
    %344 = vst [vmem:[#allocation10 + $0x30] sm:$0xff] %v274
    %345 = vst [vmem:[#allocation10 + $0x38] sm:$0xff] %v276
    %346 = vst [vmem:[#allocation10 + $0x40] sm:$0xff] %v279
    %347 = vst [vmem:[#allocation10 + $0x48] sm:$0xff] %v281
    %348 = vst [vmem:[#allocation10 + $0x50] sm:$0xff] %v284
    %349 = vst [vmem:[#allocation10 + $0x58] sm:$0xff] %v286
    %350 = vst [vmem:[#allocation10 + $0x60] sm:$0xff] %v289
    %351 = vst [vmem:[#allocation10 + $0x68] sm:$0xff] %v291
    %352 = vst [vmem:[#allocation10 + $0x70] sm:$0xff] %v294
    %353 = vst [vmem:[#allocation10 + $0x78] sm:$0xff] %v296
    %354 = vst [vmem:[#allocation10 + $0x80] sm:$0xff] %v299
    %355 = vst [vmem:[#allocation10 + $0x88] sm:$0xff] %v301
    %356 = vst [vmem:[#allocation10 + $0x90] sm:$0xff] %v304
    %357 = vst [vmem:[#allocation10 + $0x98] sm:$0xff] %v306
    %358 = vst [vmem:[#allocation10 + $0xa0] sm:$0xff] %v309
    %359 = vst [vmem:[#allocation10 + $0xa8] sm:$0xff] %v311
    %360 = vst [vmem:[#allocation10 + $0xb0] sm:$0xff] %v314
    %361 = vst [vmem:[#allocation10 + $0xb8] sm:$0xff] %v316
    %362 = vst [vmem:[#allocation10 + $0xc0] sm:$0xff] %v319
    %363 = vst [vmem:[#allocation10 + $0xc8] sm:$0xff] %v321
    %364 = vst [vmem:[#allocation10 + $0xd0] sm:$0xff] %v324
    %365 = vst [vmem:[#allocation10 + $0xd8] sm:$0xff] %v326
    %366 = vst [vmem:[#allocation10 + $0xe0] sm:$0xff] %v329
    %367 = vst [vmem:[#allocation10 + $0xe8] sm:$0xff] %v331
    %368 = vst [vmem:[#allocation10 + $0xf0] sm:$0xff] %v334
    %369 = vst [vmem:[#allocation10 + $0xf8] sm:$0xff] %v336
    %p370 = scmp.eq.s32.totalorder 0, 0
    // Predicated region
    $region22: #{tpu_custom_call.1} parent=1 // pred_check
      %p371 = pneg %p370
    $region23: #{tpu_custom_call.1} parent=1 // pred_check_branch
      %373 = sbr.rel (%p371) target = $region25
    $region24: #{tpu_custom_call.1} parent=1 // pred_region
      %374 = vst [vmem:[#allocation2] sm:$0xff] 0.0
    $region25: #{tpu_custom_call.1} parent=1 // pred_fallthru
      _
    %v375 = vlaneseq
    %v376 = vshrl.u32 %v375, 7
    %v377 = vadd.s32 %v376, 8
    %v378 = vadd.s32 %v376, 16
    %v379 = vadd.s32 %v376, 24
    %v380 = vadd.s32 %v376, 32
    %v381 = vadd.s32 %v376, 40
    %v382 = vadd.s32 %v376, 48
    %v383 = vadd.s32 %v376, 56
    %v384 = vadd.s32 %v376, 64
    %v385 = vadd.s32 %v376, 72
    %v386 = vadd.s32 %v376, 80
    %v387 = vadd.s32 %v376, 88
    %v388 = vadd.s32 %v376, 96
    %v389 = vadd.s32 %v376, 104
    %v390 = vadd.s32 %v376, 112
    %v391 = vadd.s32 %v376, 120
    %v392 = vadd.s32 %v376, 128
    %v393 = vadd.s32 %v376, 136
    %v394 = vadd.s32 %v376, 144
    %v395 = vadd.s32 %v376, 152
    %v396 = vadd.s32 %v376, 160
    %v397 = vadd.s32 %v376, 168
    %v398 = vadd.s32 %v376, 176
    %v399 = vadd.s32 %v376, 184
    %v400 = vadd.s32 %v376, 192
    %v401 = vadd.s32 %v376, 200
    %v402 = vadd.s32 %v376, 208
    %v403 = vadd.s32 %v376, 216
    %v404 = vadd.s32 %v376, 224
    %v405 = vadd.s32 %v376, 232
    %v406 = vadd.s32 %v376, 240
    %v407 = vadd.s32 %v376, 248
    %s408 = smul.u32 0, 256
    %v409 = vstv %s408
    %v410 = vadd.s32 %v376, %v409
    %v411 = vadd.s32 %v377, %v409
    %v412 = vadd.s32 %v378, %v409
    %v413 = vadd.s32 %v379, %v409
    %v414 = vadd.s32 %v380, %v409
    %v415 = vadd.s32 %v381, %v409
    %v416 = vadd.s32 %v382, %v409
    %v417 = vadd.s32 %v383, %v409
    %v418 = vadd.s32 %v384, %v409
    %v419 = vadd.s32 %v385, %v409
    %v420 = vadd.s32 %v386, %v409
    %v421 = vadd.s32 %v387, %v409
    %v422 = vadd.s32 %v388, %v409
    %v423 = vadd.s32 %v389, %v409
    %v424 = vadd.s32 %v390, %v409
    %v425 = vadd.s32 %v391, %v409
    %v426 = vadd.s32 %v392, %v409
    %v427 = vadd.s32 %v393, %v409
    %v428 = vadd.s32 %v394, %v409
    %v429 = vadd.s32 %v395, %v409
    %v430 = vadd.s32 %v396, %v409
    %v431 = vadd.s32 %v397, %v409
    %v432 = vadd.s32 %v398, %v409
    %v433 = vadd.s32 %v399, %v409
    %v434 = vadd.s32 %v400, %v409
    %v435 = vadd.s32 %v401, %v409
    %v436 = vadd.s32 %v402, %v409
    %v437 = vadd.s32 %v403, %v409
    %v438 = vadd.s32 %v404, %v409
    %v439 = vadd.s32 %v405, %v409
    %v440 = vadd.s32 %v406, %v409
    %v441 = vadd.s32 %v407, %v409
    %v442 = vstv %s52
    %vm443 = vcmp.lt.s32.totalorder %v410, %v442
    %vm444 = vcmp.lt.s32.totalorder %v411, %v442
    %vm445 = vcmp.lt.s32.totalorder %v412, %v442
    %vm446 = vcmp.lt.s32.totalorder %v413, %v442
    %vm447 = vcmp.lt.s32.totalorder %v414, %v442
    %vm448 = vcmp.lt.s32.totalorder %v415, %v442
    %vm449 = vcmp.lt.s32.totalorder %v416, %v442
    %vm450 = vcmp.lt.s32.totalorder %v417, %v442
    %vm451 = vcmp.lt.s32.totalorder %v418, %v442
    %vm452 = vcmp.lt.s32.totalorder %v419, %v442
    %vm453 = vcmp.lt.s32.totalorder %v420, %v442
    %vm454 = vcmp.lt.s32.totalorder %v421, %v442
    %vm455 = vcmp.lt.s32.totalorder %v422, %v442
    %vm456 = vcmp.lt.s32.totalorder %v423, %v442
    %vm457 = vcmp.lt.s32.totalorder %v424, %v442
    %vm458 = vcmp.lt.s32.totalorder %v425, %v442
    %vm459 = vcmp.lt.s32.totalorder %v426, %v442
    %vm460 = vcmp.lt.s32.totalorder %v427, %v442
    %vm461 = vcmp.lt.s32.totalorder %v428, %v442
    %vm462 = vcmp.lt.s32.totalorder %v429, %v442
    %vm463 = vcmp.lt.s32.totalorder %v430, %v442
    %vm464 = vcmp.lt.s32.totalorder %v431, %v442
    %vm465 = vcmp.lt.s32.totalorder %v432, %v442
    %vm466 = vcmp.lt.s32.totalorder %v433, %v442
    %vm467 = vcmp.lt.s32.totalorder %v434, %v442
    %vm468 = vcmp.lt.s32.totalorder %v435, %v442
    %vm469 = vcmp.lt.s32.totalorder %v436, %v442
    %vm470 = vcmp.lt.s32.totalorder %v437, %v442
    %vm471 = vcmp.lt.s32.totalorder %v438, %v442
    %vm472 = vcmp.lt.s32.totalorder %v439, %v442
    %vm473 = vcmp.lt.s32.totalorder %v440, %v442
    %vm474 = vcmp.lt.s32.totalorder %v441, %v442
    %v475 = vsel %vm443, 1, 0
    %v476 = vsel %vm444, 1, 0
    %v477 = vsel %vm445, 1, 0
    %v478 = vsel %vm446, 1, 0
    %v479 = vsel %vm447, 1, 0
    %v480 = vsel %vm448, 1, 0
    %v481 = vsel %vm449, 1, 0
    %v482 = vsel %vm450, 1, 0
    %v483 = vsel %vm451, 1, 0
    %v484 = vsel %vm452, 1, 0
    %v485 = vsel %vm453, 1, 0
    %v486 = vsel %vm454, 1, 0
    %v487 = vsel %vm455, 1, 0
    %v488 = vsel %vm456, 1, 0
    %v489 = vsel %vm457, 1, 0
    %v490 = vsel %vm458, 1, 0
    %v491 = vsel %vm459, 1, 0
    %v492 = vsel %vm460, 1, 0
    %v493 = vsel %vm461, 1, 0
    %v494 = vsel %vm462, 1, 0
    %v495 = vsel %vm463, 1, 0
    %v496 = vsel %vm464, 1, 0
    %v497 = vsel %vm465, 1, 0
    %v498 = vsel %vm466, 1, 0
    %v499 = vsel %vm467, 1, 0
    %v500 = vsel %vm468, 1, 0
    %v501 = vsel %vm469, 1, 0
    %v502 = vsel %vm470, 1, 0
    %v503 = vsel %vm471, 1, 0
    %v504 = vsel %vm472, 1, 0
    %v505 = vsel %vm473, 1, 0
    %v506 = vsel %vm474, 1, 0
    %vm507 = vcmp.eq.s32.totalorder %v475, 1
    %vm508 = vcmp.eq.s32.totalorder %v476, 1
    %vm509 = vcmp.eq.s32.totalorder %v477, 1
    %vm510 = vcmp.eq.s32.totalorder %v478, 1
    %vm511 = vcmp.eq.s32.totalorder %v479, 1
    %vm512 = vcmp.eq.s32.totalorder %v480, 1
    %vm513 = vcmp.eq.s32.totalorder %v481, 1
    %vm514 = vcmp.eq.s32.totalorder %v482, 1
    %vm515 = vcmp.eq.s32.totalorder %v483, 1
    %vm516 = vcmp.eq.s32.totalorder %v484, 1
    %vm517 = vcmp.eq.s32.totalorder %v485, 1
    %vm518 = vcmp.eq.s32.totalorder %v486, 1
    %vm519 = vcmp.eq.s32.totalorder %v487, 1
    %vm520 = vcmp.eq.s32.totalorder %v488, 1
    %vm521 = vcmp.eq.s32.totalorder %v489, 1
    %vm522 = vcmp.eq.s32.totalorder %v490, 1
    %vm523 = vcmp.eq.s32.totalorder %v491, 1
    %vm524 = vcmp.eq.s32.totalorder %v492, 1
    %vm525 = vcmp.eq.s32.totalorder %v493, 1
    %vm526 = vcmp.eq.s32.totalorder %v494, 1
    %vm527 = vcmp.eq.s32.totalorder %v495, 1
    %vm528 = vcmp.eq.s32.totalorder %v496, 1
    %vm529 = vcmp.eq.s32.totalorder %v497, 1
    %vm530 = vcmp.eq.s32.totalorder %v498, 1
    %vm531 = vcmp.eq.s32.totalorder %v499, 1
    %vm532 = vcmp.eq.s32.totalorder %v500, 1
    %vm533 = vcmp.eq.s32.totalorder %v501, 1
    %vm534 = vcmp.eq.s32.totalorder %v502, 1
    %vm535 = vcmp.eq.s32.totalorder %v503, 1
    %vm536 = vcmp.eq.s32.totalorder %v504, 1
    %vm537 = vcmp.eq.s32.totalorder %v505, 1
    %vm538 = vcmp.eq.s32.totalorder %v506, 1
    %v539 = vsel %vm507, %v259, 0.0
    %v540 = vsel %vm508, %v261, 0.0
    %v541 = vsel %vm509, %v264, 0.0
    %v542 = vsel %vm510, %v266, 0.0
    %v543 = vsel %vm511, %v269, 0.0
    %v544 = vsel %vm512, %v271, 0.0
    %v545 = vsel %vm513, %v274, 0.0
    %v546 = vsel %vm514, %v276, 0.0
    %v547 = vsel %vm515, %v279, 0.0
    %v548 = vsel %vm516, %v281, 0.0
    %v549 = vsel %vm517, %v284, 0.0
    %v550 = vsel %vm518, %v286, 0.0
    %v551 = vsel %vm519, %v289, 0.0
    %v552 = vsel %vm520, %v291, 0.0
    %v553 = vsel %vm521, %v294, 0.0
    %v554 = vsel %vm522, %v296, 0.0
    %v555 = vsel %vm523, %v299, 0.0
    %v556 = vsel %vm524, %v301, 0.0
    %v557 = vsel %vm525, %v304, 0.0
    %v558 = vsel %vm526, %v306, 0.0
    %v559 = vsel %vm527, %v309, 0.0
    %v560 = vsel %vm528, %v311, 0.0
    %v561 = vsel %vm529, %v314, 0.0
    %v562 = vsel %vm530, %v316, 0.0
    %v563 = vsel %vm531, %v319, 0.0
    %v564 = vsel %vm532, %v321, 0.0
    %v565 = vsel %vm533, %v324, 0.0
    %v566 = vsel %vm534, %v326, 0.0
    %v567 = vsel %vm535, %v329, 0.0
    %v568 = vsel %vm536, %v331, 0.0
    %v569 = vsel %vm537, %v334, 0.0
    %v570 = vsel %vm538, %v336, 0.0
    %v571 = vadd.f32 %v539, %v540
    %v572 = vadd.f32 %v571, %v541
    %v573 = vadd.f32 %v572, %v542
    %v574 = vadd.f32 %v573, %v543
    %v575 = vadd.f32 %v574, %v544
    %v576 = vadd.f32 %v575, %v545
    %v577 = vadd.f32 %v576, %v546
    %v578 = vadd.f32 %v577, %v547
    %v579 = vadd.f32 %v578, %v548
    %v580 = vadd.f32 %v579, %v549
    %v581 = vadd.f32 %v580, %v550
    %v582 = vadd.f32 %v581, %v551
    %v583 = vadd.f32 %v582, %v552
    %v584 = vadd.f32 %v583, %v553
    %v585 = vadd.f32 %v584, %v554
    %v586 = vadd.f32 %v585, %v555
    %v587 = vadd.f32 %v586, %v556
    %v588 = vadd.f32 %v587, %v557
    %v589 = vadd.f32 %v588, %v558
    %v590 = vadd.f32 %v589, %v559
    %v591 = vadd.f32 %v590, %v560
    %v592 = vadd.f32 %v591, %v561
    %v593 = vadd.f32 %v592, %v562
    %v594 = vadd.f32 %v593, %v563
    %v595 = vadd.f32 %v594, %v564
    %v596 = vadd.f32 %v595, %v565
    %v597 = vadd.f32 %v596, %v566
    %v598 = vadd.f32 %v597, %v567
    %v599 = vadd.f32 %v598, %v568
    %v600 = vadd.f32 %v599, %v569
    %v601 = vadd.f32 %v600, %v570
    %v602 = vrot.slane %v601, 4
    %v603 = vadd.f32 %v601, %v602
    %v604 = vrot.slane %v603, 2
    %v605 = vadd.f32 %v603, %v604
    %v606 = vrot.slane %v605, 1
    %v607 = vadd.f32 %v605, %v606
    %v608 = vmul.f32 %v539, %v539
    %v609 = vmul.f32 %v540, %v540
    %v610 = vmul.f32 %v541, %v541
    %v611 = vmul.f32 %v542, %v542
    %v612 = vmul.f32 %v543, %v543
    %v613 = vmul.f32 %v544, %v544
    %v614 = vmul.f32 %v545, %v545
    %v615 = vmul.f32 %v546, %v546
    %v616 = vmul.f32 %v547, %v547
    %v617 = vmul.f32 %v548, %v548
    %v618 = vmul.f32 %v549, %v549
    %v619 = vmul.f32 %v550, %v550
    %v620 = vmul.f32 %v551, %v551
    %v621 = vmul.f32 %v552, %v552
    %v622 = vmul.f32 %v553, %v553
    %v623 = vmul.f32 %v554, %v554
    %v624 = vmul.f32 %v555, %v555
    %v625 = vmul.f32 %v556, %v556
    %v626 = vmul.f32 %v557, %v557
    %v627 = vmul.f32 %v558, %v558
    %v628 = vmul.f32 %v559, %v559
    %v629 = vmul.f32 %v560, %v560
    %v630 = vmul.f32 %v561, %v561
    %v631 = vmul.f32 %v562, %v562
    %v632 = vmul.f32 %v563, %v563
    %v633 = vmul.f32 %v564, %v564
    %v634 = vmul.f32 %v565, %v565
    %v635 = vmul.f32 %v566, %v566
    %v636 = vmul.f32 %v567, %v567
    %v637 = vmul.f32 %v568, %v568
    %v638 = vmul.f32 %v569, %v569
    %v639 = vmul.f32 %v570, %v570
    %v640 = vadd.f32 %v608, %v609
    %v641 = vadd.f32 %v640, %v610
    %v642 = vadd.f32 %v641, %v611
    %v643 = vadd.f32 %v642, %v612
    %v644 = vadd.f32 %v643, %v613
    %v645 = vadd.f32 %v644, %v614
    %v646 = vadd.f32 %v645, %v615
    %v647 = vadd.f32 %v646, %v616
    %v648 = vadd.f32 %v647, %v617
    %v649 = vadd.f32 %v648, %v618
    %v650 = vadd.f32 %v649, %v619
    %v651 = vadd.f32 %v650, %v620
    %v652 = vadd.f32 %v651, %v621
    %v653 = vadd.f32 %v652, %v622
    %v654 = vadd.f32 %v653, %v623
    %v655 = vadd.f32 %v654, %v624
    %v656 = vadd.f32 %v655, %v625
    %v657 = vadd.f32 %v656, %v626
    %v658 = vadd.f32 %v657, %v627
    %v659 = vadd.f32 %v658, %v628
    %v660 = vadd.f32 %v659, %v629
    %v661 = vadd.f32 %v660, %v630
    %v662 = vadd.f32 %v661, %v631
    %v663 = vadd.f32 %v662, %v632
    %v664 = vadd.f32 %v663, %v633
    %v665 = vadd.f32 %v664, %v634
    %v666 = vadd.f32 %v665, %v635
    %v667 = vadd.f32 %v666, %v636
    %v668 = vadd.f32 %v667, %v637
    %v669 = vadd.f32 %v668, %v638
    %v670 = vadd.f32 %v669, %v639
    %v671 = vrot.slane %v670, 4
    %v672 = vadd.f32 %v670, %v671
    %v673 = vrot.slane %v672, 2
    %v674 = vadd.f32 %v672, %v673
    %v675 = vrot.slane %v674, 1
    %v676 = vadd.f32 %v674, %v675
    %v677 = vmul.f32 %v608, %v539
    %v678 = vmul.f32 %v609, %v540
    %v679 = vmul.f32 %v610, %v541
    %v680 = vmul.f32 %v611, %v542
    %v681 = vmul.f32 %v612, %v543
    %v682 = vmul.f32 %v613, %v544
    %v683 = vmul.f32 %v614, %v545
    %v684 = vmul.f32 %v615, %v546
    %v685 = vmul.f32 %v616, %v547
    %v686 = vmul.f32 %v617, %v548
    %v687 = vmul.f32 %v618, %v549
    %v688 = vmul.f32 %v619, %v550
    %v689 = vmul.f32 %v620, %v551
    %v690 = vmul.f32 %v621, %v552
    %v691 = vmul.f32 %v622, %v553
    %v692 = vmul.f32 %v623, %v554
    %v693 = vmul.f32 %v624, %v555
    %v694 = vmul.f32 %v625, %v556
    %v695 = vmul.f32 %v626, %v557
    %v696 = vmul.f32 %v627, %v558
    %v697 = vmul.f32 %v628, %v559
    %v698 = vmul.f32 %v629, %v560
    %v699 = vmul.f32 %v630, %v561
    %v700 = vmul.f32 %v631, %v562
    %v701 = vmul.f32 %v632, %v563
    %v702 = vmul.f32 %v633, %v564
    %v703 = vmul.f32 %v634, %v565
    %v704 = vmul.f32 %v635, %v566
    %v705 = vmul.f32 %v636, %v567
    %v706 = vmul.f32 %v637, %v568
    %v707 = vmul.f32 %v638, %v569
    %v708 = vmul.f32 %v639, %v570
    %v709 = vadd.f32 %v677, %v678
    %v710 = vadd.f32 %v709, %v679
    %v711 = vadd.f32 %v710, %v680
    %v712 = vadd.f32 %v711, %v681
    %v713 = vadd.f32 %v712, %v682
    %v714 = vadd.f32 %v713, %v683
    %v715 = vadd.f32 %v714, %v684
    %v716 = vadd.f32 %v715, %v685
    %v717 = vadd.f32 %v716, %v686
    %v718 = vadd.f32 %v717, %v687
    %v719 = vadd.f32 %v718, %v688
    %v720 = vadd.f32 %v719, %v689
    %v721 = vadd.f32 %v720, %v690
    %v722 = vadd.f32 %v721, %v691
    %v723 = vadd.f32 %v722, %v692
    %v724 = vadd.f32 %v723, %v693
    %v725 = vadd.f32 %v724, %v694
    %v726 = vadd.f32 %v725, %v695
    %v727 = vadd.f32 %v726, %v696
    %v728 = vadd.f32 %v727, %v697
    %v729 = vadd.f32 %v728, %v698
    %v730 = vadd.f32 %v729, %v699
    %v731 = vadd.f32 %v730, %v700
    %v732 = vadd.f32 %v731, %v701
    %v733 = vadd.f32 %v732, %v702
    %v734 = vadd.f32 %v733, %v703
    %v735 = vadd.f32 %v734, %v704
    %v736 = vadd.f32 %v735, %v705
    %v737 = vadd.f32 %v736, %v706
    %v738 = vadd.f32 %v737, %v707
    %v739 = vadd.f32 %v738, %v708
    %v740 = vrot.slane %v739, 4
    %v741 = vadd.f32 %v739, %v740
    %v742 = vrot.slane %v741, 2
    %v743 = vadd.f32 %v741, %v742
    %v744 = vrot.slane %v743, 1
    %v745 = vadd.f32 %v743, %v744
    %v746 = vmul.f32 %v677, %v539
    %v747 = vmul.f32 %v678, %v540
    %v748 = vmul.f32 %v679, %v541
    %v749 = vmul.f32 %v680, %v542
    %v750 = vmul.f32 %v681, %v543
    %v751 = vmul.f32 %v682, %v544
    %v752 = vmul.f32 %v683, %v545
    %v753 = vmul.f32 %v684, %v546
    %v754 = vmul.f32 %v685, %v547
    %v755 = vmul.f32 %v686, %v548
    %v756 = vmul.f32 %v687, %v549
    %v757 = vmul.f32 %v688, %v550
    %v758 = vmul.f32 %v689, %v551
    %v759 = vmul.f32 %v690, %v552
    %v760 = vmul.f32 %v691, %v553
    %v761 = vmul.f32 %v692, %v554
    %v762 = vmul.f32 %v693, %v555
    %v763 = vmul.f32 %v694, %v556
    %v764 = vmul.f32 %v695, %v557
    %v765 = vmul.f32 %v696, %v558
    %v766 = vmul.f32 %v697, %v559
    %v767 = vmul.f32 %v698, %v560
    %v768 = vmul.f32 %v699, %v561
    %v769 = vmul.f32 %v700, %v562
    %v770 = vmul.f32 %v701, %v563
    %v771 = vmul.f32 %v702, %v564
    %v772 = vmul.f32 %v703, %v565
    %v773 = vmul.f32 %v704, %v566
    %v774 = vmul.f32 %v705, %v567
    %v775 = vmul.f32 %v706, %v568
    %v776 = vmul.f32 %v707, %v569
    %v777 = vmul.f32 %v708, %v570
    %v778 = vadd.f32 %v746, %v747
    %v779 = vadd.f32 %v778, %v748
    %v780 = vadd.f32 %v779, %v749
    %v781 = vadd.f32 %v780, %v750
    %v782 = vadd.f32 %v781, %v751
    %v783 = vadd.f32 %v782, %v752
    %v784 = vadd.f32 %v783, %v753
    %v785 = vadd.f32 %v784, %v754
    %v786 = vadd.f32 %v785, %v755
    %v787 = vadd.f32 %v786, %v756
    %v788 = vadd.f32 %v787, %v757
    %v789 = vadd.f32 %v788, %v758
    %v790 = vadd.f32 %v789, %v759
    %v791 = vadd.f32 %v790, %v760
    %v792 = vadd.f32 %v791, %v761
    %v793 = vadd.f32 %v792, %v762
    %v794 = vadd.f32 %v793, %v763
    %v795 = vadd.f32 %v794, %v764
    %v796 = vadd.f32 %v795, %v765
    %v797 = vadd.f32 %v796, %v766
    %v798 = vadd.f32 %v797, %v767
    %v799 = vadd.f32 %v798, %v768
    %v800 = vadd.f32 %v799, %v769
    %v801 = vadd.f32 %v800, %v770
    %v802 = vadd.f32 %v801, %v771
    %v803 = vadd.f32 %v802, %v772
    %v804 = vadd.f32 %v803, %v773
    %v805 = vadd.f32 %v804, %v774
    %v806 = vadd.f32 %v805, %v775
    %v807 = vadd.f32 %v806, %v776
    %v808 = vadd.f32 %v807, %v777
    %v809 = vrot.slane %v808, 4
    %v810 = vadd.f32 %v808, %v809
    %v811 = vrot.slane %v810, 2
    %v812 = vadd.f32 %v810, %v811
    %v813 = vrot.slane %v812, 1
    %v814 = vadd.f32 %v812, %v813
    %v815 = vmul.f32 %v746, %v539
    %v816 = vmul.f32 %v747, %v540
    %v817 = vmul.f32 %v748, %v541
    %v818 = vmul.f32 %v749, %v542
    %v819 = vmul.f32 %v750, %v543
    %v820 = vmul.f32 %v751, %v544
    %v821 = vmul.f32 %v752, %v545
    %v822 = vmul.f32 %v753, %v546
    %v823 = vmul.f32 %v754, %v547
    %v824 = vmul.f32 %v755, %v548
    %v825 = vmul.f32 %v756, %v549
    %v826 = vmul.f32 %v757, %v550
    %v827 = vmul.f32 %v758, %v551
    %v828 = vmul.f32 %v759, %v552
    %v829 = vmul.f32 %v760, %v553
    %v830 = vmul.f32 %v761, %v554
    %v831 = vmul.f32 %v762, %v555
    %v832 = vmul.f32 %v763, %v556
    %v833 = vmul.f32 %v764, %v557
    %v834 = vmul.f32 %v765, %v558
    %v835 = vmul.f32 %v766, %v559
    %v836 = vmul.f32 %v767, %v560
    %v837 = vmul.f32 %v768, %v561
    %v838 = vmul.f32 %v769, %v562
    %v839 = vmul.f32 %v770, %v563
    %v840 = vmul.f32 %v771, %v564
    %v841 = vmul.f32 %v772, %v565
    %v842 = vmul.f32 %v773, %v566
    %v843 = vmul.f32 %v774, %v567
    %v844 = vmul.f32 %v775, %v568
    %v845 = vmul.f32 %v776, %v569
    %v846 = vmul.f32 %v777, %v570
    %v847 = vadd.f32 %v815, %v816
    %v848 = vadd.f32 %v847, %v817
    %v849 = vadd.f32 %v848, %v818
    %v850 = vadd.f32 %v849, %v819
    %v851 = vadd.f32 %v850, %v820
    %v852 = vadd.f32 %v851, %v821
    %v853 = vadd.f32 %v852, %v822
    %v854 = vadd.f32 %v853, %v823
    %v855 = vadd.f32 %v854, %v824
    %v856 = vadd.f32 %v855, %v825
    %v857 = vadd.f32 %v856, %v826
    %v858 = vadd.f32 %v857, %v827
    %v859 = vadd.f32 %v858, %v828
    %v860 = vadd.f32 %v859, %v829
    %v861 = vadd.f32 %v860, %v830
    %v862 = vadd.f32 %v861, %v831
    %v863 = vadd.f32 %v862, %v832
    %v864 = vadd.f32 %v863, %v833
    %v865 = vadd.f32 %v864, %v834
    %v866 = vadd.f32 %v865, %v835
    %v867 = vadd.f32 %v866, %v836
    %v868 = vadd.f32 %v867, %v837
    %v869 = vadd.f32 %v868, %v838
    %v870 = vadd.f32 %v869, %v839
    %v871 = vadd.f32 %v870, %v840
    %v872 = vadd.f32 %v871, %v841
    %v873 = vadd.f32 %v872, %v842
    %v874 = vadd.f32 %v873, %v843
    %v875 = vadd.f32 %v874, %v844
    %v876 = vadd.f32 %v875, %v845
    %v877 = vadd.f32 %v876, %v846
    %v878 = vrot.slane %v877, 4
    %v879 = vadd.f32 %v877, %v878
    %v880 = vrot.slane %v879, 2
    %v881 = vadd.f32 %v879, %v880
    %v882 = vrot.slane %v881, 1
    %v883 = vadd.f32 %v881, %v882
    %v884 = vld [vmem:[#allocation2] sm:$0xff]
    %vm885 = vcmask 1040384
    %v886 = vsel %vm885, %v607, %v676
    %vm887 = vcmask 1041408
    %v888 = vsel %vm887, %v886, %v745
    %vm889 = vcmask 1042432
    %v890 = vsel %vm889, %v888, %v814
    %vm891 = vcmask 1043456
    %v892 = vsel %vm891, %v890, %v883
    %vm893 = vcmask 1044480
    %v894 = vsel %vm893, %v892, 0.0
    %v895 = vadd.f32 %v884, %v894
    %896 = vst [vmem:[#allocation2] sm:$0xff] %v895
    // Predicated region
    $region26: #{tpu_custom_call.1} parent=1 // pred_check
      %p897 = pneg %p370
    $region27: #{tpu_custom_call.1} parent=1 // pred_check_branch
      %899 = sbr.rel (%p897) target = $region29
    $region28: #{tpu_custom_call.1} parent=1 // pred_region
      %s900 = scvt.s32.f32 %s52
      %v901 = vstv %s900
      %v902 = vrcp.pop %v901
      %v903 = vmul.f32 %v901, %v902
      %v904 = vsub.f32 1.0, %v903
      %v905 = vmul.f32 %v902, %v904
      %v906 = vadd.f32 %v902, %v905
      %vm907 = vweird.f32 %v901
      %vm908 = vweird.f32 %v902
      %vm909 = vmor %vm907, %vm908
      %v910 = vsel %vm909, %v902, %v906
      %v911 = vand.u32 2147483647, %v901
      %vm912 = vcmp.eq.f32.partialorder %v911, 8.507059e+37
      %v913 = vand.u32 %v901, 2147483648
      %v914 = vor.u32 1.1754944e-38, %v913
      %v915 = vsel %vm912, %v914, %v910
      %s916 = vtos %v915
      %v917 = vld [vmem:[#allocation2] sm:$0xff]
      %v918 = vstv %s916
      %v919 = vmul.f32 %v917, %v918
      %v920 = vmul.f32 %v919, %v919
      %v921 = vmul.f32 %v920, %v919
      %v923 = vrot.slane %v920, 7
      %v925 = vsub.f32 %v919, %v923
      %v926 = vmul.f32 %v919, 3.0
      %v928 = vrot.slane %v919, 1
      %v930 = vmul.f32 %v926, %v928
      %v932 = vrot.slane %v930, 6
      %v934 = vsub.f32 %v919, %v932
      %v935 = vmul.f32 %v921, 2.0
      %v937 = vrot.slane %v935, 6
      %v939 = vadd.f32 %v934, %v937
      %v940 = vmul.f32 %v919, 4.0
      %v941 = vrot.slane %v919, 2
      %v943 = vmul.f32 %v940, %v941
      %v945 = vrot.slane %v943, 5
      %v947 = vsub.f32 %v919, %v945
      %v948 = vmul.f32 %v920, 6.0
      %v949 = vmul.f32 %v948, %v928
      %v951 = vrot.slane %v949, 5
      %v953 = vadd.f32 %v947, %v951
      %v954 = vmul.f32 %v920, 3.0
      %v955 = vmul.f32 %v954, %v920
      %v957 = vrot.slane %v955, 5
      %v959 = vsub.f32 %v953, %v957
      %v960 = vmul.f32 %v919, 5.0
      %v961 = vrot.slane %v919, 3
      %v963 = vmul.f32 %v960, %v961
      %v965 = vrot.slane %v963, 4
      %v967 = vsub.f32 %v919, %v965
      %v968 = vmul.f32 %v920, 10.0
      %v969 = vmul.f32 %v968, %v941
      %v971 = vrot.slane %v969, 4
      %v973 = vadd.f32 %v967, %v971
      %v974 = vmul.f32 %v921, 10.0
      %v975 = vmul.f32 %v974, %v928
      %v977 = vrot.slane %v975, 4
      %v979 = vsub.f32 %v973, %v977
      %v980 = vmul.f32 %v921, 4.0
      %v981 = vmul.f32 %v980, %v920
      %v983 = vrot.slane %v981, 4
      %v985 = vadd.f32 %v979, %v983
      %v986 = vsel %vm885, %v919, %v925
      %v987 = vsel %vm887, %v986, %v939
      %v988 = vsel %vm889, %v987, %v959
      %v989 = vsel %vm891, %v988, %v985
      %v990 = vsel %vm893, %v989, 0.0
      %991 = vst [vmem:[#allocation11] sm:$0xff] %v990
    $region29: #{tpu_custom_call.1} parent=1 // pred_fallthru
      _
    // Predicated region
    $region30: #{tpu_custom_call.1} parent=1 // pred_check
      _
    $region31: #{tpu_custom_call.1} parent=1 // pred_check_branch
      %993 = sbr.rel (0) target = $region33
    $region32: #{tpu_custom_call.1} parent=1 // pred_region
      %995 = vsyncadd [#allocation7], 0
      %s996 = sshll.u32 [#allocation10], 4
      %s997 = int_to_ptr.vmem [resolvable:$true] %s996
      %s998 = sshll.u32 %s4, 4
      %s999 = int_to_ptr.hbm [resolvable:$true] %s998
      %1004 = dma.vmem_to_hbm [thread:$0]  %s997, 4096, %s999, [#allocation7], 128, 128, 8
    $region33: #{tpu_custom_call.1} parent=1 // pred_fallthru
      _
    // Predicated region
    $region34: #{tpu_custom_call.1} parent=1 // pred_check
      _
    $region35: #{tpu_custom_call.1} parent=1 // pred_check_branch
      %1006 = sbr.rel (0) target = $region37
    $region36: #{tpu_custom_call.1} parent=1 // pred_region
      %1008 = vsyncadd [#allocation12], 0
      %s1010 = sshll.u32 [#allocation11], 4
      %s1011 = int_to_ptr.vmem [resolvable:$true] %s1010
      %s1012 = sshll.u32 %s5, 4
      %s1013 = int_to_ptr.hbm [resolvable:$true] %s1012
      %1015 = dma.vmem_to_hbm [thread:$0]  %s1011, 128, %s1013, [#allocation12]
    $region37: #{tpu_custom_call.1} parent=1 // pred_fallthru
      _
    // Predicated region
    $region38: #{tpu_custom_call.1} parent=1 // pred_check
      _
    $region39: #{tpu_custom_call.1} parent=1 // pred_check_branch
      %1017 = sbr.rel (0) target = $region41
    $region40: #{tpu_custom_call.1} parent=1 // pred_region
      %1019 = dma.done [#allocation7], 4096
    $region41: #{tpu_custom_call.1} parent=1 // pred_fallthru
      _
    // Predicated region
    $region42: #{tpu_custom_call.1} parent=1 // pred_check
      _
    $region43: #{tpu_custom_call.1} parent=1 // pred_check_branch
      %1021 = sbr.rel (0) target = $region45
    $region44: #{tpu_custom_call.1} parent=1 // pred_region
      %1023 = dma.done [#allocation12], 128
    $region45: #{tpu_custom_call.1} parent=1 // pred_fallthru
      _
    %1024 = vsyncpa [#allocation6], 1
    %1025 = vsyncpa [#allocation9], 1
    %1026 = vsyncpa [#allocation7], 1
    %1027 = vsyncpa [#allocation12], 1

</llo_original>
